<compile_context>
chip_gen: v5e
topology: v5e:2x2
jax: 0.10.0
libtpu: 0.0.40
codegen_flags: <defaults>
</compile_context>

<pallas_src>
import math

import jax
import jax.numpy as jnp
import numpy as np
from jax.experimental import pallas as pl
from jax.experimental.pallas import tpu as pltpu


def gated_attention_kernel(x_ref, uvw_ref, uvb_ref, ww_ref, wb_ref, out_ref,
                           *maybe_attn_ref):
    """One grid step = G bags.

    x_ref   : (G, N, D) features (native dtype, fed straight to the MXU)
    uvw_ref : (D, 2D)   fused [U | V] weight
    uvb_ref : (1, 2D)   fused [U | V] bias
    ww_ref  : (1, D)    scoring row, pre-scaled by 1/temperature
    wb_ref  : (1, 1)    scoring bias, pre-scaled by 1/temperature
    out_ref : (G, D)    scaled attention (sublane-dense store)
    maybe_attn_ref[0] : (G, N, 1) f32 attention weights (optional output)
    """
    g, n, d = x_ref.shape
    x = x_ref[...]                                                # (G, N, D)

    # Fused U|V projection: one wide MXU matmul with f32 accumulation.
    hu = jnp.dot(x.reshape(g * n, d), uvw_ref[...],
                 preferred_element_type=jnp.float32) + uvb_ref[...]   # (G*N, 2D)
    hu = hu.reshape(g, n, 2 * d)

    # Gating: tanh half * sigmoid half (EUP transcendentals, VPU multiply).
    gated = jnp.tanh(hu[..., :d]) * jax.nn.sigmoid(hu[..., d:])   # (G, N, D) f32

    # Attention logits: broadcast-multiply by the pre-scaled w row and reduce
    # over the lane axis (VPU + XLU) instead of a width-1 MXU matmul.
    logits = jnp.sum(gated * ww_ref[...], axis=-1, keepdims=True) + wb_ref[...]

    # Softmax over the sequence axis (per bag), max-subtracted for stability.
    m = jnp.max(logits, axis=1, keepdims=True)
    p = jnp.exp(logits - m)
    denom = jnp.sum(p, axis=1, keepdims=True)
    # Exact divide: denom is a per-bag scalar, so the cost is negligible and
    # an approx reciprocal would only cost accuracy.
    attn = p / denom                                              # (G, N, 1) f32

    # Weighted sum over the bag: VPU multiply + sublane reduce -> (G, D).
    out_ref[...] = jnp.sum(attn * x.astype(jnp.float32), axis=1).astype(out_ref.dtype)

    if maybe_attn_ref:   # only present when the caller asked for the weights
        maybe_attn_ref[0][...] = attn.astype(maybe_attn_ref[0].dtype)


def _pick_batch_block(B, N, D, itemsize, vmem_budget_bytes=8 * 1024 * 1024):
    """Bags per grid step: largest divisor of B whose double-buffered feature
    tile fits the budget, keeping the (G, D) output block legal (G == B or a
    multiple of 8) and preferring >= 2 grid steps so multiple TCs get work."""
    per_bag = 2 * N * D * itemsize
    cap = max(1, vmem_budget_bytes // per_bag)
    valid = [g for g in range(1, B + 1)
             if B % g == 0 and g <= cap and (g == B or g % 8 == 0)]
    if not valid:
        return B
    multi_step = [g for g in valid if B // g >= 2]
    return max(multi_step) if multi_step else max(valid)


def gated_attention(features, params, temperature=1.0,
                    return_attention_weights=False, batch_block=None):
    """features: (B, N, D). Returns (B, D) or ((B, D), (B, N, 1))."""
    B, N, D = features.shape
    uw, ub, vw, vb, ww, wb = params

    # Fuse U|V into one wide projection; fold 1/temperature into the scorer.
    uv_w = jnp.concatenate([uw, vw], axis=1)            # (D, 2D)
    uv_b = jnp.concatenate([ub, vb], axis=1)            # (1, 2D)
    inv_t = jnp.float32(1.0 / temperature)
    w_row = (ww * inv_t).reshape(1, D)                  # (1, D)
    w_b = (wb * inv_t).reshape(1, 1)                    # (1, 1)

    if batch_block is None:
        batch_block = _pick_batch_block(B, N, D, features.dtype.itemsize)
    G = batch_block
    assert B % G == 0, "batch_block must divide the batch size"

    out_shapes = [jax.ShapeDtypeStruct((B, D), features.dtype)]
    out_specs = [pl.BlockSpec((G, D), lambda b: (b, 0))]
    if return_attention_weights:
        # f32 weights (don't round the internal softmax down to input dtype).
        out_shapes.append(jax.ShapeDtypeStruct((B, N, 1), jnp.float32))
        out_specs.append(pl.BlockSpec((G, N, 1), lambda b: (b, 0, 0)))

    results = pl.pallas_call(
        gated_attention_kernel,
        out_shape=tuple(out_shapes),
        grid_spec=pltpu.PrefetchScalarGridSpec(
            num_scalar_prefetch=0,
            grid=(B // G,),
            in_specs=[
                pl.BlockSpec((G, N, D), lambda b: (b, 0, 0)),     # features tile
                pl.BlockSpec((D, 2 * D), lambda b: (0, 0)),       # fused U|V weight
                pl.BlockSpec((1, 2 * D), lambda b: (0, 0)),       # fused U|V bias
                pl.BlockSpec((1, D), lambda b: (0, 0)),           # w row (pre-scaled)
                pl.BlockSpec((1, 1), lambda b: (0, 0)),           # w bias (pre-scaled)
            ],
            out_specs=tuple(out_specs),
        ),
        compiler_params=pltpu.CompilerParams(
            dimension_semantics=("parallel",),
            vmem_limit_bytes=32 * 1024 * 1024,
        ),
    )(features, uv_w, uv_b, w_row, w_b)

    if return_attention_weights:
        return results[0], results[1]
    return results[0]


def gated_attention_ref(features, params, temperature=1.0):
    """Pure-JAX reference mirroring the PyTorch forward."""
    uw, ub, vw, vb, ww, wb = params
    h_v = jnp.tanh(features @ uw + ub)                      # tanh(self.U(features))
    u_v = jax.nn.sigmoid(features @ vw + vb)                # sigmoid(self.V(features))
    logits = ((h_v * u_v) @ ww + wb) / temperature          # (B, N, 1)
    attn = jax.nn.softmax(logits, axis=1)                   # softmax over dim 1
    scaled = jnp.einsum("bnq,bnd->bqd", attn, features)     # attn^T @ features
    return scaled[:, 0, :], attn


def init_params(key, dim):
    """Deterministic init matching nn.Linear shapes (stored as (in, out))."""
    ks = jax.random.split(key, 6)
    bound = 1.0 / math.sqrt(dim)
    uw = jax.random.uniform(ks[0], (dim, dim), jnp.float32, -bound, bound)
    ub = jax.random.uniform(ks[1], (1, dim), jnp.float32, -bound, bound)
    vw = jax.random.uniform(ks[2], (dim, dim), jnp.float32, -bound, bound)
    vb = jax.random.uniform(ks[3], (1, dim), jnp.float32, -bound, bound)
    ww = jax.random.uniform(ks[4], (dim, 1), jnp.float32, -bound, bound)
    wb = jax.random.uniform(ks[5], (1, 1), jnp.float32, -bound, bound)
    return uw, ub, vw, vb, ww, wb


if __name__ == "__main__":
    B, N, D = 2, 8, 32
    temperature = 1.0

    key = jax.random.PRNGKey(0)
    k_feat, k_par = jax.random.split(key)
    features = jax.random.normal(k_feat, (B, N, D), jnp.float32)
    params = init_params(k_par, D)

    # Path 1: with attention weights.
    scaled, attn = gated_attention(features, params, temperature,
                                   return_attention_weights=True)
    scaled = jax.block_until_ready(scaled)
    attn = jax.block_until_ready(attn)

    # Path 2: scaled attention only (single lane-dense output, no (N,1) store).
    scaled_only = jax.block_until_ready(
        gated_attention(features, params, temperature))

    scaled_ref, attn_ref = gated_attention_ref(features, params, temperature)

    np.testing.assert_allclose(np.asarray(scaled), np.asarray(scaled_ref),
                               rtol=1e-5, atol=1e-5)
    np.testing.assert_allclose(np.asarray(attn), np.asarray(attn_ref),
                               rtol=1e-5, atol=1e-5)
    np.testing.assert_allclose(np.asarray(scaled_only), np.asarray(scaled_ref),
                               rtol=1e-5, atol=1e-5)
    assert scaled.shape == (B, D) and attn.shape == (B, N, 1)

    print("KERNEL_OK")
</pallas_src>

<mosaic_0001>
module attributes {stable_mosaic.version = 11 : i64} {
  func.func @gated_attention_kernel(%arg0: i32, %arg1: memref<2x8x32xf32, #tpu.memory_space<vmem>>, %arg2: memref<32x64xf32, #tpu.memory_space<vmem>>, %arg3: memref<1x64xf32, #tpu.memory_space<vmem>>, %arg4: memref<1x32xf32, #tpu.memory_space<vmem>>, %arg5: memref<1x1xf32, #tpu.memory_space<vmem>>, %arg6: memref<2x32xf32, #tpu.memory_space<vmem>>, %arg7: memref<2x8x1xf32, #tpu.memory_space<vmem>>) attributes {dimension_semantics = [#tpu.dimension_semantics<parallel>], iteration_bounds = array<i64: 1>, scalar_prefetch = 0 : i64, scratch_operands = 0 : i64, tpu.core_type = #tpu.core_type<tc>, window_params = [{transform_indices = @transform_0, window_bounds = array<i64: 2, 8, 32>}, {pipeline_mode = #tpu.pipeline_mode<synchronous>, transform_indices = @transform_1, window_bounds = array<i64: 32, 64>}, {pipeline_mode = #tpu.pipeline_mode<synchronous>, transform_indices = @transform_2, window_bounds = array<i64: 1, 64>}, {pipeline_mode = #tpu.pipeline_mode<synchronous>, transform_indices = @transform_3, window_bounds = array<i64: 1, 32>}, {pipeline_mode = #tpu.pipeline_mode<synchronous>, transform_indices = @transform_4, window_bounds = array<i64: 1, 1>}, {transform_indices = @transform_5, window_bounds = array<i64: 2, 32>}, {transform_indices = @transform_6, window_bounds = array<i64: 2, 8, 1>}]} {
    %c0 = arith.constant 0 : index
    %c0_0 = arith.constant 0 : index
    %c0_1 = arith.constant 0 : index
    %0 = vector.load %arg1[%c0, %c0_0, %c0_1] : memref<2x8x32xf32, #tpu.memory_space<vmem>>, vector<2x8x32xf32>
    %1 = vector.shape_cast %0 : vector<2x8x32xf32> to vector<16x32xf32>
    %c0_2 = arith.constant 0 : index
    %c0_3 = arith.constant 0 : index
    %2 = vector.load %arg2[%c0_2, %c0_3] : memref<32x64xf32, #tpu.memory_space<vmem>>, vector<32x64xf32>
    %cst = arith.constant dense<0.000000e+00> : vector<16x64xf32>
    %3 = tpu.matmul %1, %2, %cst {dimension_numbers = #tpu.dot_dimension_numbers<[1], [0], [0], [1], [0, 0, 1, 1], [], []>} : vector<16x32xf32>, vector<32x64xf32>, vector<16x64xf32> -> vector<16x64xf32>
    %c0_4 = arith.constant 0 : index
    %c0_5 = arith.constant 0 : index
    %4 = vector.load %arg3[%c0_4, %c0_5] : memref<1x64xf32, #tpu.memory_space<vmem>>, vector<1x64xf32>
    %5 = vector.broadcast %4 : vector<1x64xf32> to vector<16x64xf32>
    %6 = arith.addf %3, %5 : vector<16x64xf32>
    %7 = vector.shape_cast %6 : vector<16x64xf32> to vector<2x8x64xf32>
    %8 = vector.extract_strided_slice %7 {offsets = [0, 0, 0], sizes = [2, 8, 32], strides = [1, 1, 1]} : vector<2x8x64xf32> to vector<2x8x32xf32>
    %9 = math.tanh %8 : vector<2x8x32xf32>
    %10 = vector.extract_strided_slice %7 {offsets = [0, 0, 32], sizes = [2, 8, 32], strides = [1, 1, 1]} : vector<2x8x64xf32> to vector<2x8x32xf32>
    %11 = arith.negf %10 : vector<2x8x32xf32>
    %12 = math.exp %11 : vector<2x8x32xf32>
    %cst_6 = arith.constant 1.000000e+00 : f32
    %13 = vector.broadcast %cst_6 : f32 to vector<2x8x32xf32>
    %14 = arith.addf %13, %12 : vector<2x8x32xf32>
    %15 = arith.divf %13, %14 : vector<2x8x32xf32>
    %16 = arith.mulf %9, %15 : vector<2x8x32xf32>
    %c0_7 = arith.constant 0 : index
    %c0_8 = arith.constant 0 : index
    %17 = vector.load %arg4[%c0_7, %c0_8] : memref<1x32xf32, #tpu.memory_space<vmem>>, vector<1x32xf32>
    %18 = vector.shape_cast %17 : vector<1x32xf32> to vector<1x1x32xf32>
    %19 = vector.broadcast %18 : vector<1x1x32xf32> to vector<2x8x32xf32>
    %20 = arith.mulf %16, %19 : vector<2x8x32xf32>
    %cst_9 = arith.constant dense<0.000000e+00> : vector<2x8xf32>
    %21 = vector.multi_reduction <add>, %20, %cst_9 [2] : vector<2x8x32xf32> to vector<2x8xf32>
    %22 = vector.shape_cast %21 : vector<2x8xf32> to vector<2x8x1xf32>
    %c0_10 = arith.constant 0 : index
    %c0_11 = arith.constant 0 : index
    %23 = vector.load %arg5[%c0_10, %c0_11] : memref<1x1xf32, #tpu.memory_space<vmem>>, vector<1x1xf32>
    %24 = vector.shape_cast %23 : vector<1x1xf32> to vector<1x1x1xf32>
    %25 = vector.broadcast %24 : vector<1x1x1xf32> to vector<2x8x1xf32>
    %26 = arith.addf %22, %25 : vector<2x8x1xf32>
    %cst_12 = arith.constant dense<0xFF800000> : vector<2x1xf32>
    %27 = vector.multi_reduction <maximumf>, %26, %cst_12 [1] : vector<2x8x1xf32> to vector<2x1xf32>
    %28 = vector.shape_cast %27 : vector<2x1xf32> to vector<2x1x1xf32>
    %29 = vector.broadcast %28 : vector<2x1x1xf32> to vector<2x8x1xf32>
    %30 = arith.subf %26, %29 : vector<2x8x1xf32>
    %31 = math.exp %30 : vector<2x8x1xf32>
    %cst_13 = arith.constant dense<0.000000e+00> : vector<2x1xf32>
    %32 = vector.multi_reduction <add>, %31, %cst_13 [1] : vector<2x8x1xf32> to vector<2x1xf32>
    %33 = vector.shape_cast %32 : vector<2x1xf32> to vector<2x1x1xf32>
    %34 = vector.broadcast %33 : vector<2x1x1xf32> to vector<2x8x1xf32>
    %35 = arith.divf %31, %34 : vector<2x8x1xf32>
    %36 = vector.broadcast %35 : vector<2x8x1xf32> to vector<2x8x32xf32>
    %37 = arith.mulf %36, %0 : vector<2x8x32xf32>
    %cst_14 = arith.constant dense<0.000000e+00> : vector<2x32xf32>
    %38 = vector.multi_reduction <add>, %37, %cst_14 [1] : vector<2x8x32xf32> to vector<2x32xf32>
    %c0_15 = arith.constant 0 : index
    %c0_16 = arith.constant 0 : index
    %39 = vector.load %arg6[%c0_15, %c0_16] : memref<2x32xf32, #tpu.memory_space<vmem>>, vector<2x32xf32>
    tpu.vector_store %arg6[%c0_15, %c0_16], %38 {strides = array<i32>} : memref<2x32xf32, #tpu.memory_space<vmem>>, vector<2x32xf32>,
    %c0_17 = arith.constant 0 : index
    %c0_18 = arith.constant 0 : index
    %c0_19 = arith.constant 0 : index
    %40 = vector.load %arg7[%c0_17, %c0_18, %c0_19] : memref<2x8x1xf32, #tpu.memory_space<vmem>>, vector<2x8x1xf32>
    tpu.vector_store %arg7[%c0_17, %c0_18, %c0_19], %35 {strides = array<i32>} : memref<2x8x1xf32, #tpu.memory_space<vmem>>, vector<2x8x1xf32>,
    return
  }
  func.func @transform_0(%arg0: i32) -> (i32, i32, i32) {
    %c0_i32 = arith.constant 0 : i32
    %c0_i32_0 = arith.constant 0 : i32
    %c0_i32_1 = arith.constant 0 : i32
    return %arg0, %c0_i32, %c0_i32_0 : i32, i32, i32
  }
  func.func @transform_1(%arg0: i32) -> (i32, i32) {
    %c0_i32 = arith.constant 0 : i32
    %c0_i32_0 = arith.constant 0 : i32
    %c0_i32_1 = arith.constant 0 : i32
    return %c0_i32, %c0_i32_0 : i32, i32
  }
  func.func @transform_2(%arg0: i32) -> (i32, i32) {
    %c0_i32 = arith.constant 0 : i32
    %c0_i32_0 = arith.constant 0 : i32
    %c0_i32_1 = arith.constant 0 : i32
    return %c0_i32, %c0_i32_0 : i32, i32
  }
  func.func @transform_3(%arg0: i32) -> (i32, i32) {
    %c0_i32 = arith.constant 0 : i32
    %c0_i32_0 = arith.constant 0 : i32
    %c0_i32_1 = arith.constant 0 : i32
    return %c0_i32, %c0_i32_0 : i32, i32
  }
  func.func @transform_4(%arg0: i32) -> (i32, i32) {
    %c0_i32 = arith.constant 0 : i32
    %c0_i32_0 = arith.constant 0 : i32
    %c0_i32_1 = arith.constant 0 : i32
    return %c0_i32, %c0_i32_0 : i32, i32
  }
  func.func @transform_5(%arg0: i32) -> (i32, i32) {
    %c0_i32 = arith.constant 0 : i32
    %c0_i32_0 = arith.constant 0 : i32
    return %arg0, %c0_i32 : i32, i32
  }
  func.func @transform_6(%arg0: i32) -> (i32, i32, i32) {
    %c0_i32 = arith.constant 0 : i32
    %c0_i32_0 = arith.constant 0 : i32
    %c0_i32_1 = arith.constant 0 : i32
    return %arg0, %c0_i32, %c0_i32_0 : i32, i32, i32
  }
}

</mosaic_0001>

<llo_original>
// kernel: tpu_custom_call.1
$region0: #{tpu_custom_call.1}
  #allocation0 [shape = 'u32[]', space=smem, size = 0x4, offset = 0x4, fixed_abs, tag = 'smem constant byte address 0x4 - core index']
  #allocation1 [shape = 'u32[72,128]{1,0:T(1,128)}', space=vmem, size = 0x9000, scoped, tag = 'internal scratch']
  #allocation2 [shape = 'f32[1,1]{1,0:T(1,128)S(1)}', space=vmem, size = 0x200, scoped, tag = 'scoped memory for tpu_custom_call.1']
  %s0 = inlined_call_operand.hbm [shape: f32[2,8,32], index: 0, kind: input, shape index: {}]
  %s1 = inlined_call_operand.hbm [shape: f32[32,64], index: 1, kind: input, shape index: {}]
  %s2 = inlined_call_operand.vmem [shape: f32[1,64], index: 2, kind: input, shape index: {}]
  %s3 = inlined_call_operand.vmem [shape: f32[1,32], index: 3, kind: input, shape index: {}]
  %s4 = inlined_call_operand.<no memory space> [shape: f32[1,1], index: 4, kind: input, shape index: {}]
  %s5 = inlined_call_operand.hbm [shape: f32[2,32], index: 5, kind: output, shape index: {0}]
  %s6 = inlined_call_operand.vmem [shape: f32[2,8,1], index: 6, kind: output, shape index: {1}]
  %7 = xla_tuple %s5, %s6
  %s8 = sld [smem:[#allocation0]]
  $region46: #{tpu_custom_call.1} parent=0
    _
  %s10 = ssub.s32 1, %s8
  %s11 = scalar_select 0, %s10, %s8
  %v12 = vstv %s4
  %13 = vst [vmem:[#allocation2] sm:$0x1] %v12
  $region1: #{tpu_custom_call.1} parent=0
    #allocation3 [shape = 'u8[8192]{0}', space=vmem, size = 0x2000, scoped, tag = 'input window, operand 0, single buffered']
    #allocation4 [shape = 's32[1]{0}', space=sflag, size = 0x4, scoped, tag = 'scoped memory for tpu_custom_call.1']
    #allocation5 [shape = 's32[1]{0}', space=sflag, size = 0x4, scoped, tag = 'scoped memory for tpu_custom_call.1']
    #allocation6 [shape = 'u8[16384]{0}', space=vmem, size = 0x4000, scoped, tag = 'input window, operand 1, single buffered']
    #allocation7 [shape = 's32[1]{0}', space=sflag, size = 0x4, scoped, tag = 'scoped memory for tpu_custom_call.1']
    #allocation8 [shape = 'u8[1024]{0}', space=vmem, size = 0x400, scoped, tag = 'output window, operand 0, single buffered']
    %14 = vsyncpa [#allocation4], 0
    %15 = vsyncpa [#allocation7], 0
    %16 = vsyncpa [#allocation5], 0
    // Predicated region
    $region2: #{tpu_custom_call.1} parent=1 // pred_check
      _
    $region3: #{tpu_custom_call.1} parent=1 // pred_check_branch
      %18 = sbr.rel (0) target = $region5
    $region4: #{tpu_custom_call.1} parent=1 // pred_region
      %20 = vsyncadd [#allocation4], 0
      %s21 = sshll.u32 %s0, 4
      %s22 = int_to_ptr.hbm [resolvable:$true] %s21
      %s23 = sshll.u32 [#allocation3], 4
      %s24 = int_to_ptr.vmem [resolvable:$true] %s23
      %29 = dma.hbm_to_vmem [thread:$0]  %s22, 256, %s24, [#allocation4], 128, 128, 8
    $region5: #{tpu_custom_call.1} parent=1 // pred_fallthru
      _
    // Predicated region
    $region6: #{tpu_custom_call.1} parent=1 // pred_check
      _
    $region7: #{tpu_custom_call.1} parent=1 // pred_check_branch
      %31 = sbr.rel (0) target = $region9
    $region8: #{tpu_custom_call.1} parent=1 // pred_region
      %33 = vsyncadd [#allocation7], 0
      %s34 = sshll.u32 %s1, 4
      %s35 = int_to_ptr.hbm [resolvable:$true] %s34
      %s36 = sshll.u32 [#allocation6], 4
      %s37 = int_to_ptr.vmem [resolvable:$true] %s36
      %42 = dma.hbm_to_vmem [thread:$0]  %s35, 512, %s37, [#allocation7], 128, 128, 8
    $region9: #{tpu_custom_call.1} parent=1 // pred_fallthru
      _
    // Predicated region
    $region10: #{tpu_custom_call.1} parent=1 // pred_check
      _
    $region11: #{tpu_custom_call.1} parent=1 // pred_check_branch
      %44 = sbr.rel (0) target = $region13
    $region12: #{tpu_custom_call.1} parent=1 // pred_region
      _
    $region13: #{tpu_custom_call.1} parent=1 // pred_fallthru
      _
    // Predicated region
    $region14: #{tpu_custom_call.1} parent=1 // pred_check
      _
    $region15: #{tpu_custom_call.1} parent=1 // pred_check_branch
      %46 = sbr.rel (0) target = $region17
    $region16: #{tpu_custom_call.1} parent=1 // pred_region
      _
    $region17: #{tpu_custom_call.1} parent=1 // pred_fallthru
      _
    // Predicated region
    $region18: #{tpu_custom_call.1} parent=1 // pred_check
      _
    $region19: #{tpu_custom_call.1} parent=1 // pred_check_branch
      %48 = sbr.rel (0) target = $region21
    $region20: #{tpu_custom_call.1} parent=1 // pred_region
      _
    $region21: #{tpu_custom_call.1} parent=1 // pred_fallthru
      _
    // Predicated region
    $region22: #{tpu_custom_call.1} parent=1 // pred_check
      _
    $region23: #{tpu_custom_call.1} parent=1 // pred_check_branch
      %50 = sbr.rel (0) target = $region25
    $region24: #{tpu_custom_call.1} parent=1 // pred_region
      %52 = dma.done [#allocation4], 256
    $region25: #{tpu_custom_call.1} parent=1 // pred_fallthru
      _
    // Predicated region
    $region26: #{tpu_custom_call.1} parent=1 // pred_check
      _
    $region27: #{tpu_custom_call.1} parent=1 // pred_check_branch
      %54 = sbr.rel (0) target = $region29
    $region28: #{tpu_custom_call.1} parent=1 // pred_region
      %56 = dma.done [#allocation7], 512
    $region29: #{tpu_custom_call.1} parent=1 // pred_fallthru
      _
    %v57 = vld [vmem:[#allocation3] sm:$0xff]
    %v58 = vld [vmem:[#allocation3 + $0x8] sm:$0xff]
    %v59 = vld [vmem:[#allocation6] sm:$0xff]
    %v60 = vld [vmem:[#allocation6 + $0x8] sm:$0xff]
    %v61 = vld [vmem:[#allocation6 + $0x10] sm:$0xff]
    %v62 = vld [vmem:[#allocation6 + $0x18] sm:$0xff]
    %v63 = vld [vmem:[%s2] sm:$0x1]
    %v65 = vperm.slane %v63, 0
    %vm67 = vcmask 261120
    %v69 = vsel %vm67, %v57, 0
    %v72 = vsel %vm67, %v58, 0
    %74 = vmatpush.msra.mxu0 0.0
    %75 = vmatpush.msra.mxu0 0.0
    %76 = vmatpush.msra.mxu0 0.0
    %77 = vmatpush.msra.mxu0 0.0
    %78 = vmatpush.msra.mxu0 0.0
    %79 = vmatpush.msra.mxu0 0.0
    %80 = vmatpush.msra.mxu0 0.0
    %81 = vmatpush.msra.mxu0 0.0
    %82 = vmatpush.msra.mxu0 0.0
    %83 = vmatpush.msra.mxu0 0.0
    %84 = vmatpush.msra.mxu0 0.0
    %85 = vmatpush.msra.mxu0 0.0
    %86 = vmatpush.msra.mxu0 %v62
    %87 = vmatpush.msra.mxu0 %v61
    %88 = vmatpush.msra.mxu0 %v60
    %89 = vmatpush.msra.mxu0 %v59
    %90 = vmatmul.f32.gmra.mxu0 %v69
    %v91 = vpop.f32.mrf.mxu0
    %v92 = vadd.f32 %v65, %v91
    %93 = vmatmul.f32.gmra.mxu0 %v72
    %v94 = vpop.f32.mrf.mxu0
    %v95 = vadd.f32 %v65, %v94
    %96 = vdwg.mxu0
    %v97 = vtanh.pop %v92
    %v98 = vtanh.pop %v95
    %v99 = vxor.u32 %v92, 2147483648
    %v100 = vxor.u32 %v95, 2147483648
    %v101 = vmul.f32 %v99, 1.442695
    %v102 = vpow.pop %v101
    %v103 = vmul.f32 %v100, 1.442695
    %v104 = vpow.pop %v103
    %v105 = vadd.f32 %v102, 1.0
    %v106 = vadd.f32 %v104, 1.0
    %v107 = vrcp.pop %v105
    %v108 = vmul.f32 %v105, %v107
    %v109 = vsub.f32 1.0, %v108
    %v110 = vmul.f32 %v107, %v109
    %v111 = vadd.f32 %v107, %v110
    %vm112 = vweird.f32 %v105
    %vm113 = vweird.f32 %v107
    %vm114 = vmor %vm112, %vm113
    %v115 = vsel %vm114, %v107, %v111
    %v116 = vand.u32 2147483647, %v105
    %vm117 = vcmp.eq.f32.partialorder %v116, 8.507059e+37
    %v118 = vand.u32 %v105, 2147483648
    %v119 = vor.u32 1.1754944e-38, %v118
    %v120 = vsel %vm117, %v119, %v115
    %v121 = vmul.f32 1.0, %v120
    %v122 = vrcp.pop %v106
    %v123 = vmul.f32 %v106, %v122
    %v124 = vsub.f32 1.0, %v123
    %v125 = vmul.f32 %v122, %v124
    %v126 = vadd.f32 %v122, %v125
    %vm127 = vweird.f32 %v106
    %vm128 = vweird.f32 %v122
    %vm129 = vmor %vm127, %vm128
    %v130 = vsel %vm129, %v122, %v126
    %v131 = vand.u32 2147483647, %v106
    %vm132 = vcmp.eq.f32.partialorder %v131, 8.507059e+37
    %v133 = vand.u32 %v106, 2147483648
    %v134 = vor.u32 1.1754944e-38, %v133
    %v135 = vsel %vm132, %v134, %v130
    %v136 = vmul.f32 1.0, %v135
    %139 = vrot.lane.b32.xlu0 %v121, 96
    %v140 = vpop.permute.xlu0 %139
    %141 = vrot.lane.b32.xlu0 %v136, 96
    %v142 = vpop.permute.xlu0 %141
    %v145 = vmul.f32 %v97, %v140
    %v146 = vmul.f32 %v98, %v142
    %v147 = vld [vmem:[%s3] sm:$0x1]
    %v149 = vperm.slane %v147, 0
    %v151 = vmul.f32 %v145, %v149
    %v152 = vmul.f32 %v146, %v149
    %v153 = vsel %vm67, %v151, 0.0
    %154 = vadd.xlane.f32.xlu0 %v153
    %v155 = vpop.xlane.xlu0 %154
    %v156 = vsel %vm67, %v152, 0.0
    %157 = vadd.xlane.f32.xlu0 %v156
    %v158 = vpop.xlane.xlu0 %157
    %v159 = vld [vmem:[#allocation2] sm:$0x1]
    %v161 = vperm.slane %v159, 0
    %v163 = vadd.f32 %v155, %v161
    %v164 = vadd.f32 %v158, %v161
    %vm165 = vcmask 7168
    %v166 = vsel %vm165, %v163, -inf
    %v167 = vrot.slane %v166, 4
    %v168 = vmax.f32 %v166, %v167
    %v169 = vrot.slane %v168, 2
    %v170 = vmax.f32 %v168, %v169
    %v171 = vrot.slane %v170, 1
    %v172 = vmax.f32 %v170, %v171
    %v173 = vsel %vm165, %v164, -inf
    %v174 = vrot.slane %v173, 4
    %v175 = vmax.f32 %v173, %v174
    %v176 = vrot.slane %v175, 2
    %v177 = vmax.f32 %v175, %v176
    %v178 = vrot.slane %v177, 1
    %v179 = vmax.f32 %v177, %v178
    %v180 = vsub.f32 %v163, %v172
    %v181 = vsub.f32 %v164, %v179
    %v182 = vmul.f32 %v180, 1.442695
    %v183 = vpow.pop %v182
    %v184 = vmul.f32 %v181, 1.442695
    %v185 = vpow.pop %v184
    %v186 = vsel %vm165, %v183, 0.0
    %v187 = vrot.slane %v186, 4
    %v188 = vadd.f32 %v186, %v187
    %v189 = vrot.slane %v188, 2
    %v190 = vadd.f32 %v188, %v189
    %v191 = vrot.slane %v190, 1
    %v192 = vadd.f32 %v190, %v191
    %v193 = vsel %vm165, %v185, 0.0
    %v194 = vrot.slane %v193, 4
    %v195 = vadd.f32 %v193, %v194
    %v196 = vrot.slane %v195, 2
    %v197 = vadd.f32 %v195, %v196
    %v198 = vrot.slane %v197, 1
    %v199 = vadd.f32 %v197, %v198
    %v200 = vrcp.pop %v192
    %v201 = vmul.f32 %v192, %v200
    %v202 = vsub.f32 1.0, %v201
    %v203 = vmul.f32 %v200, %v202
    %v204 = vadd.f32 %v200, %v203
    %vm205 = vweird.f32 %v192
    %vm206 = vweird.f32 %v200
    %vm207 = vmor %vm205, %vm206
    %v208 = vsel %vm207, %v200, %v204
    %v209 = vand.u32 2147483647, %v192
    %vm210 = vcmp.eq.f32.partialorder %v209, 8.507059e+37
    %v211 = vand.u32 %v192, 2147483648
    %v212 = vor.u32 1.1754944e-38, %v211
    %v213 = vsel %vm210, %v212, %v208
    %v214 = vmul.f32 %v183, %v213
    %v215 = vrcp.pop %v199
    %v216 = vmul.f32 %v199, %v215
    %v217 = vsub.f32 1.0, %v216
    %v218 = vmul.f32 %v215, %v217
    %v219 = vadd.f32 %v215, %v218
    %vm220 = vweird.f32 %v199
    %vm221 = vweird.f32 %v215
    %vm222 = vmor %vm220, %vm221
    %v223 = vsel %vm222, %v215, %v219
    %v224 = vand.u32 2147483647, %v199
    %vm225 = vcmp.eq.f32.partialorder %v224, 8.507059e+37
    %v226 = vand.u32 %v199, 2147483648
    %v227 = vor.u32 1.1754944e-38, %v226
    %v228 = vsel %vm225, %v227, %v223
    %v229 = vmul.f32 %v185, %v228
    %231 = vset.pattern.permute.xlu0 0
    %232 = vperm.xlu0 %231, %v214
    %v233 = vpop.permute.xlu0 %232
    %236 = vset.pattern.permute.xlu0 0
    %237 = vperm.xlu0 %236, %v229
    %v238 = vpop.permute.xlu0 %237
    %v240 = vmul.f32 %v233, %v57
    %v241 = vmul.f32 %v238, %v58
    %v242 = vsel %vm67, %v240, 0.0
    %v243 = vrot.slane %v242, 4
    %v244 = vadd.f32 %v242, %v243
    %v245 = vrot.slane %v244, 2
    %v246 = vadd.f32 %v244, %v245
    %v247 = vrot.slane %v246, 1
    %v248 = vadd.f32 %v246, %v247
    %v249 = vsel %vm67, %v241, 0.0
    %v250 = vrot.slane %v249, 4
    %v251 = vadd.f32 %v249, %v250
    %v252 = vrot.slane %v251, 2
    %v253 = vadd.f32 %v251, %v252
    %v254 = vrot.slane %v253, 1
    %v255 = vadd.f32 %v253, %v254
    %vm258 = vcmask 1041409
    %v259 = vsel %vm258, %v255, %v248
    %vm261 = vcmask 254976
    %262 = vst.msk [vmem:[#allocation8] sm:$0x3] %vm261, %v259
    %263 = vst.msk [vmem:[%s6] sm:$0xff] %vm165, %v214
    %264 = vst.msk [vmem:[%s6 + $0x8] sm:$0xff] %vm165, %v229
    // Predicated region
    $region30: #{tpu_custom_call.1} parent=1 // pred_check
      _
    $region31: #{tpu_custom_call.1} parent=1 // pred_check_branch
      %266 = sbr.rel (0) target = $region33
    $region32: #{tpu_custom_call.1} parent=1 // pred_region
      %268 = vsyncadd [#allocation5], 0
      %s270 = sshll.u32 [#allocation8], 4
      %s271 = int_to_ptr.vmem [resolvable:$true] %s270
      %s272 = sshll.u32 %s5, 4
      %s273 = int_to_ptr.hbm [resolvable:$true] %s272
      %275 = dma.vmem_to_hbm [thread:$0]  %s271, 32, %s273, [#allocation5]
    $region33: #{tpu_custom_call.1} parent=1 // pred_fallthru
      _
    // Predicated region
    $region34: #{tpu_custom_call.1} parent=1 // pred_check
      _
    $region35: #{tpu_custom_call.1} parent=1 // pred_check_branch
      %277 = sbr.rel (0) target = $region37
    $region36: #{tpu_custom_call.1} parent=1 // pred_region
      _
    $region37: #{tpu_custom_call.1} parent=1 // pred_fallthru
      _
    // Predicated region
    $region38: #{tpu_custom_call.1} parent=1 // pred_check
      _
    $region39: #{tpu_custom_call.1} parent=1 // pred_check_branch
      %279 = sbr.rel (0) target = $region41
    $region40: #{tpu_custom_call.1} parent=1 // pred_region
      %281 = dma.done [#allocation5], 32
    $region41: #{tpu_custom_call.1} parent=1 // pred_fallthru
      _
    // Predicated region
    $region42: #{tpu_custom_call.1} parent=1 // pred_check
      _
    $region43: #{tpu_custom_call.1} parent=1 // pred_check_branch
      %283 = sbr.rel (0) target = $region45
    $region44: #{tpu_custom_call.1} parent=1 // pred_region
      _
    $region45: #{tpu_custom_call.1} parent=1 // pred_fallthru
      _
    %284 = vsyncpa [#allocation4], 1
    %285 = vsyncpa [#allocation7], 1
    %286 = vsyncpa [#allocation5], 1

</llo_original>
